<compile_context>
chip_gen: v5e
topology: v5e:2x2
jax: 0.10.0
libtpu: 0.0.40
codegen_flags: <defaults>
</compile_context>

<pallas_src>
import functools

import numpy as np
import jax
import jax.numpy as jnp
from jax.experimental import pallas as pl
from jax.experimental.pallas import tpu as pltpu


def _round_up(x, m):
    return ((x + m - 1) // m) * m


# ----------------------------- Pallas kernel ------------------------------

def _fmri_linear_kernel(x_ref, w_ref, b_ref, o_ref):
    """One (n, k) grid step of o = x @ w + b.

    grid = (Nv_pad//tn, D_pad//tk); k (the reduction) is innermost, and the
    output BlockSpec revisits the same (B_pad, tn) block across k, so o_ref
    stays resident in VMEM and doubles as the float32 accumulator.

    x_ref is the whole (B_pad, D_pad) input, resident in VMEM (constant index
    map); we slice the k-th feature chunk locally instead of re-DMA-ing x.
    """
    k = pl.program_id(1)
    tk = w_ref.shape[0]                              # static block size
    off = pl.multiple_of(k * tk, 128)                # aligned dynamic offset

    @pl.when(k == 0)
    def _():
        # Initialize the accumulator with the bias -> no epilogue RMW pass.
        o_ref[...] = jnp.broadcast_to(b_ref[...], o_ref.shape)

    o_ref[...] += jnp.dot(
        x_ref[:, pl.ds(off, tk)], w_ref[...],
        preferred_element_type=jnp.float32,
    )


@functools.partial(jax.jit, static_argnames=("tk", "tn"))
def fmri_model(x_flat, w_p, b_p, *, tk, tn):
    """Pallas-backed linear fMRI predictor.

    x_flat: [B, D]        any float dtype; padded + streamed as bf16 (cheap, small)
    w_p   : [D_pad, Nv_pad] bf16, already padded at construction time
    b_p   : [1, Nv_pad]     f32,  already padded at construction time
    returns fmri: [B, Nv_pad] float32  (caller slices the real voxel columns)
    """
    B, D = x_flat.shape
    D_pad, Nv_pad = w_p.shape
    assert D <= D_pad and D_pad % tk == 0 and Nv_pad % tn == 0

    B_pad = _round_up(B, 8)            # full f32 sublane -> unmasked stores
    x_p = jnp.pad(x_flat.astype(jnp.bfloat16),
                  ((0, B_pad - B), (0, D_pad - D)))

    grid = (Nv_pad // tn, D_pad // tk)     # (n, k): reduction axis last

    cost = pl.CostEstimate(
        flops=2 * B_pad * D_pad * Nv_pad,
        transcendentals=0,
        bytes_accessed=(x_p.size * 2           # x read once (VMEM-resident)
                        + w_p.size * 2          # W streamed once
                        + b_p.size * 4
                        + B_pad * Nv_pad * 4),  # output written once
    )

    out = pl.pallas_call(
        _fmri_linear_kernel,
        out_shape=jax.ShapeDtypeStruct((B_pad, Nv_pad), jnp.float32),
        grid_spec=pltpu.PrefetchScalarGridSpec(
            num_scalar_prefetch=0,
            grid=grid,
            in_specs=[
                # x: whole padded array, constant block index -> fetched once,
                # stays resident in VMEM for the entire grid.
                pl.BlockSpec((B_pad, D_pad), lambda n, k: (0, 0)),
                # W: (tk, tn) tile, streamed once over the full grid.
                pl.BlockSpec((tk, tn), lambda n, k: (k, n)),
                # bias: (1, tn) tile per N block.
                pl.BlockSpec((1, tn), lambda n, k: (0, n)),
            ],
            out_specs=pl.BlockSpec((B_pad, tn), lambda n, k: (0, n)),
        ),
        compiler_params=pltpu.CompilerParams(
            # N tiles are independent; K is the reduction.
            dimension_semantics=("parallel", "arbitrary"),
            # Covers double-buffered 2048x2048 bf16 W tiles (16 MiB) + resident
            # x + output/bias blocks, while staying under v7x's 64 MiB VMEM.
            vmem_limit_bytes=48 * 1024 * 1024,
        ),
        cost_estimate=cost,
    )(x_p, w_p, b_p)

    return out[:B]


# ----------------------------- wrapper module -----------------------------

class DreamWrapperPallas:
    """JAX/Pallas equivalent of dream_wrapper(model, roi_dic).

    The generic wrapped nn.Module is instantiated as a linear readout
    (fmri = flatten(x) @ W + b); ROI extraction mirrors roi_extractor.forward.
    All weight preprocessing (ROI-union column selection, padding, bf16 cast)
    happens once here, not per forward call.
    """

    def __init__(self, w, b, roi_dic, *, tk=2048, tn=2048):
        w = np.asarray(w, dtype=np.float32)                  # [D, Nv]
        b = np.asarray(b, dtype=np.float32).reshape(1, -1)   # [1, Nv]
        D, Nv = w.shape

        # ---- ROI bookkeeping + voxel-axis reduction to the union of ROIs ----
        idx_list = []
        for name, idx in roi_dic.items():
            idx_np = np.asarray(idx)
            if idx_np.dtype == np.bool_:                     # boolean roi mask
                idx_np = np.nonzero(idx_np)[0]
            idx_list.append((name, idx_np.astype(np.int64).ravel()))

        if idx_list:
            union = np.unique(np.concatenate([i for _, i in idx_list]))
        else:
            union = np.arange(Nv, dtype=np.int64)
        Nv_eff = int(union.size)

        # Remap every ROI into positions within the reduced voxel axis;
        # contiguous index sets become free slices, others fall back to gather.
        self._rois = {}
        for name, idx_np in idx_list:
            pos = np.searchsorted(union, idx_np)
            if pos.size > 0 and np.all(np.diff(pos) == 1):
                self._rois[name] = ("slice", int(pos[0]), int(pos[-1]) + 1)
            else:
                self._rois[name] = ("gather", jnp.asarray(pos, dtype=jnp.int32))

        w_used = w[:, union]                                 # [D, Nv_eff]
        b_used = b[:, union]                                 # [1, Nv_eff]

        # ---- static tile sizes for the life of the wrapper ----
        self._tk = min(tk, _round_up(D, 128))
        self._tn = min(tn, _round_up(Nv_eff, 128))
        D_pad = _round_up(D, self._tk)
        Nv_pad = _round_up(Nv_eff, self._tn)

        # ---- pad + cast ONCE (done here, not inside the jitted forward) ----
        w_p = np.zeros((D_pad, Nv_pad), dtype=np.float32)
        w_p[:D, :Nv_eff] = w_used
        b_p = np.zeros((1, Nv_pad), dtype=np.float32)
        b_p[:, :Nv_eff] = b_used

        self.w = jnp.asarray(w_p, dtype=jnp.bfloat16)        # streamed bf16
        self.b = jnp.asarray(b_p, dtype=jnp.float32)
        self._D = D

    def __call__(self, x):
        """x: [B, 3, H, W] -> dict of {roi_name: fmri[:, roi]}"""
        B = x.shape[0]
        x_flat = x.reshape(B, -1)                    # NCHW flatten, like torch
        assert x_flat.shape[1] == self._D
        fmri = fmri_model(x_flat, self.w, self.b, tk=self._tk, tn=self._tn)
        out = {}
        for name, spec in self._rois.items():
            if spec[0] == "slice":
                out[name] = fmri[:, spec[1]:spec[2]]          # roi_extractor
            else:
                out[name] = jnp.take(fmri, spec[1], axis=1)
        return out


# --------------------------------- main ----------------------------------

if __name__ == "__main__":
    key = jax.random.PRNGKey(0)
    k_x, k_w, k_b = jax.random.split(key, 3)

    # Small shapes consistent with the forward: image batch [B, 3, h, w]
    B, C, H, W = 2, 3, 16, 16
    D = C * H * W                       # 768 flattened features
    Nv = 256                            # number of voxels predicted

    # Deterministic synthetic "model" parameters (linear fMRI predictor)
    w = (jax.random.normal(k_w, (D, Nv), dtype=jnp.float32)
         * (1.0 / jnp.sqrt(jnp.float32(D))))
    b = jax.random.normal(k_b, (1, Nv), dtype=jnp.float32) * 0.01

    # ROI dictionary: index arrays into the voxel axis
    roi_dic = {
        "V1": np.arange(0, 64, dtype=np.int32),
        "V2": np.arange(64, 192, dtype=np.int32),
        "hV4": np.arange(192, 256, dtype=np.int32),
    }

    x = jax.random.normal(k_x, (B, C, H, W), dtype=jnp.float32)

    model = DreamWrapperPallas(w, b, roi_dic)
    out = model(x)
    out = jax.tree_util.tree_map(jax.block_until_ready, out)

    # Reference check: same bf16-rounded operands, f32 accumulation.
    x_bf = x.reshape(B, -1).astype(jnp.bfloat16).astype(jnp.float32)
    w_bf = w.astype(jnp.bfloat16).astype(jnp.float32)
    fmri_ref = jnp.dot(x_bf, w_bf, precision=jax.lax.Precision.HIGHEST) + b
    for name, idx in roi_dic.items():
        ref = fmri_ref[:, jnp.asarray(idx)]
        assert out[name].shape == ref.shape, name
        assert jnp.allclose(out[name], ref, atol=1e-3, rtol=1e-3), name

    print("KERNEL_OK")
</pallas_src>

<mosaic_0001>
module attributes {stable_mosaic.version = 11 : i64} {
  func.func @_fmri_linear_kernel(%arg0: i32, %arg1: i32, %arg2: memref<8x768xbf16, #tpu.memory_space<vmem>>, %arg3: memref<768x256xbf16, #tpu.memory_space<vmem>>, %arg4: memref<1x256xf32, #tpu.memory_space<vmem>>, %arg5: memref<8x256xf32, #tpu.memory_space<vmem>>) attributes {dimension_semantics = [#tpu.dimension_semantics<parallel>, #tpu.dimension_semantics<arbitrary>], iteration_bounds = array<i64: 1, 1>, scalar_prefetch = 0 : i64, scratch_operands = 0 : i64, tpu.core_type = #tpu.core_type<tc>, window_params = [{pipeline_mode = #tpu.pipeline_mode<synchronous>, transform_indices = @transform_0, window_bounds = array<i64: 8, 768>}, {transform_indices = @transform_1, window_bounds = array<i64: 768, 256>}, {transform_indices = @transform_2, window_bounds = array<i64: 1, 256>}, {transform_indices = @transform_3, window_bounds = array<i64: 8, 256>}]} {
    %c768_i32 = arith.constant 768 : i32
    %0 = arith.muli %arg1, %c768_i32 : i32
    %1 = tpu.assume_multiple %0, 128 : i32
    %c0_i32 = arith.constant 0 : i32
    %2 = arith.cmpi eq, %arg1, %c0_i32 : i32
    %3 = arith.extui %2 : i1 to i32
    %c0_i32_0 = arith.constant 0 : i32
    %4 = arith.cmpi ne, %3, %c0_i32_0 : i32
    scf.if %4 {
      %c0_7 = arith.constant 0 : index
      %c0_8 = arith.constant 0 : index
      %12 = vector.load %arg4[%c0_7, %c0_8] : memref<1x256xf32, #tpu.memory_space<vmem>>, vector<1x256xf32>
      %13 = vector.shape_cast %12 : vector<1x256xf32> to vector<1x256xf32>
      %14 = vector.broadcast %13 : vector<1x256xf32> to vector<8x256xf32>
      %c0_9 = arith.constant 0 : index
      %c0_10 = arith.constant 0 : index
      %15 = vector.load %arg5[%c0_9, %c0_10] : memref<8x256xf32, #tpu.memory_space<vmem>>, vector<8x256xf32>
      tpu.vector_store %arg5[%c0_9, %c0_10], %14 {strides = array<i32>} : memref<8x256xf32, #tpu.memory_space<vmem>>, vector<8x256xf32>,
    } else {
    }
    %c0 = arith.constant 0 : index
    %c0_1 = arith.constant 0 : index
    %5 = vector.load %arg5[%c0, %c0_1] : memref<8x256xf32, #tpu.memory_space<vmem>>, vector<8x256xf32>
    %c0_2 = arith.constant 0 : index
    %6 = arith.index_cast %1 : i32 to index
    %7 = vector.load %arg2[%c0_2, %6] : memref<8x768xbf16, #tpu.memory_space<vmem>>, vector<8x768xbf16>
    %c0_3 = arith.constant 0 : index
    %c0_4 = arith.constant 0 : index
    %8 = vector.load %arg3[%c0_3, %c0_4] : memref<768x256xbf16, #tpu.memory_space<vmem>>, vector<768x256xbf16>
    %cst = arith.constant dense<0.000000e+00> : vector<8x256xf32>
    %9 = tpu.matmul %7, %8, %cst {dimension_numbers = #tpu.dot_dimension_numbers<[1], [0], [0], [1], [0, 0, 1, 1], [], []>} : vector<8x768xbf16>, vector<768x256xbf16>, vector<8x256xf32> -> vector<8x256xf32>
    %10 = arith.addf %5, %9 : vector<8x256xf32>
    %c0_5 = arith.constant 0 : index
    %c0_6 = arith.constant 0 : index
    %11 = vector.load %arg5[%c0_5, %c0_6] : memref<8x256xf32, #tpu.memory_space<vmem>>, vector<8x256xf32>
    tpu.vector_store %arg5[%c0_5, %c0_6], %10 {strides = array<i32>} : memref<8x256xf32, #tpu.memory_space<vmem>>, vector<8x256xf32>,
    return
  }
  func.func @transform_0(%arg0: i32, %arg1: i32) -> (i32, i32) {
    %c0_i32 = arith.constant 0 : i32
    %c0_i32_0 = arith.constant 0 : i32
    %c0_i32_1 = arith.constant 0 : i32
    return %c0_i32, %c0_i32_0 : i32, i32
  }
  func.func @transform_1(%arg0: i32, %arg1: i32) -> (i32, i32) {
    %c0_i32 = arith.constant 0 : i32
    return %arg1, %arg0 : i32, i32
  }
  func.func @transform_2(%arg0: i32, %arg1: i32) -> (i32, i32) {
    %c0_i32 = arith.constant 0 : i32
    %c0_i32_0 = arith.constant 0 : i32
    return %c0_i32, %arg0 : i32, i32
  }
  func.func @transform_3(%arg0: i32, %arg1: i32) -> (i32, i32) {
    %c0_i32 = arith.constant 0 : i32
    %c0_i32_0 = arith.constant 0 : i32
    return %c0_i32, %arg0 : i32, i32
  }
}

</mosaic_0001>

<llo_original>
// kernel: fmri_model.1
$region0: #{fmri_model.1}
  #allocation0 [shape = 'u32[]', space=smem, size = 0x4, offset = 0x4, fixed_abs, tag = 'smem constant byte address 0x4 - core index']
  #allocation1 [shape = 'u32[72,128]{1,0:T(1,128)}', space=vmem, size = 0x9000, scoped, tag = 'internal scratch']
  %s0 = inlined_call_operand.vmem [shape: bf16[8,768], index: 0, kind: input, shape index: {}]
  %s1 = inlined_call_operand.hbm [shape: bf16[768,256], index: 1, kind: input, shape index: {}]
  %s2 = inlined_call_operand.vmem [shape: f32[1,256], index: 2, kind: input, shape index: {}]
  %s3 = inlined_call_operand.vmem [shape: f32[8,256], index: 3, kind: output, shape index: {}]
  %s4 = sld [smem:[#allocation0]]
  $region30: #{fmri_model.1} parent=0
    _
  %s6 = ssub.s32 1, %s4
  %s7 = scalar_select 0, %s6, %s4
  $region1: #{fmri_model.1} parent=0
    #allocation2 [shape = 'u8[393216]{0}', space=vmem, size = 0x60000, scoped, tag = 'input window, operand 1, single buffered']
    #allocation3 [shape = 's32[1]{0}', space=sflag, size = 0x4, scoped, tag = 'scoped memory for fmri_model.1']
    %8 = vsyncpa [#allocation3], 0
    // Predicated region
    $region2: #{fmri_model.1} parent=1 // pred_check
      _
    $region3: #{fmri_model.1} parent=1 // pred_check_branch
      %10 = sbr.rel (0) target = $region5
    $region4: #{fmri_model.1} parent=1 // pred_region
      _
    $region5: #{fmri_model.1} parent=1 // pred_fallthru
      _
    // Predicated region
    $region6: #{fmri_model.1} parent=1 // pred_check
      _
    $region7: #{fmri_model.1} parent=1 // pred_check_branch
      %12 = sbr.rel (0) target = $region9
    $region8: #{fmri_model.1} parent=1 // pred_region
      %14 = vsyncadd [#allocation3], 0
      %s15 = sshll.u32 %s1, 4
      %s16 = int_to_ptr.hbm [resolvable:$true] %s15
      %s17 = sshll.u32 [#allocation2], 4
      %s18 = int_to_ptr.vmem [resolvable:$true] %s17
      %23 = dma.hbm_to_vmem [thread:$0]  %s16, 12288, %s18, [#allocation3], 128, 128, 8
    $region9: #{fmri_model.1} parent=1 // pred_fallthru
      _
    // Predicated region
    $region10: #{fmri_model.1} parent=1 // pred_check
      _
    $region11: #{fmri_model.1} parent=1 // pred_check_branch
      %25 = sbr.rel (0) target = $region13
    $region12: #{fmri_model.1} parent=1 // pred_region
      _
    $region13: #{fmri_model.1} parent=1 // pred_fallthru
      _
    // Predicated region
    $region14: #{fmri_model.1} parent=1 // pred_check
      _
    $region15: #{fmri_model.1} parent=1 // pred_check_branch
      %27 = sbr.rel (0) target = $region17
    $region16: #{fmri_model.1} parent=1 // pred_region
      %29 = dma.done [#allocation3], 12288
    $region17: #{fmri_model.1} parent=1 // pred_fallthru
      _
    %s30 = smul.u32 0, 768
    %p31 = scmp.eq.s32.totalorder 0, 0
    // Predicated region
    $region18: #{fmri_model.1} parent=1 // pred_check
      %p32 = pneg %p31
    $region19: #{fmri_model.1} parent=1 // pred_check_branch
      %34 = sbr.rel (%p32) target = $region21
    $region20: #{fmri_model.1} parent=1 // pred_region
      %v35 = vld [vmem:[%s2] sm:$0x3]
      %v37 = vperm.slane %v35, 0
      %v38 = vperm.slane %v35, 1
      %41 = vst [vmem:[%s3] sm:$0xff] %v37
      %42 = vst [vmem:[%s3 + $0x8] sm:$0xff] %v38
    $region21: #{fmri_model.1} parent=1 // pred_fallthru
      _
    %v43 = vld [vmem:[%s3] sm:$0xff]
    %v44 = vld [vmem:[%s3 + $0x8] sm:$0xff]
    %s45 = sshra.s32 %s30, 7
    %s46 = sand.u32 %s30, 127
    %s47 = smul.addr %s45, 4
    %s48 = scalar_lea.vmem %s0, %s47
    %v49 = vld [vmem:[%s48] sm:$0xff]
    %v50 = vld [vmem:[%s48 + $0x8] sm:$0xff]
    %v51 = vld [vmem:[%s48 + $0x10] sm:$0xff]
    %v52 = vld [vmem:[#allocation2] sm:$0xff]
    %v53 = vld [vmem:[#allocation2 + $0x8] sm:$0xff]
    %v54 = vld [vmem:[#allocation2 + $0x10] sm:$0xff]
    %v55 = vld [vmem:[#allocation2 + $0x18] sm:$0xff]
    %v56 = vld [vmem:[#allocation2 + $0x20] sm:$0xff]
    %v57 = vld [vmem:[#allocation2 + $0x28] sm:$0xff]
    %v58 = vld [vmem:[#allocation2 + $0x30] sm:$0xff]
    %v59 = vld [vmem:[#allocation2 + $0x38] sm:$0xff]
    %v60 = vld [vmem:[#allocation2 + $0x40] sm:$0xff]
    %v61 = vld [vmem:[#allocation2 + $0x48] sm:$0xff]
    %v62 = vld [vmem:[#allocation2 + $0x50] sm:$0xff]
    %v63 = vld [vmem:[#allocation2 + $0x58] sm:$0xff]
    %v64 = vld [vmem:[#allocation2 + $0x60] sm:$0xff]
    %v65 = vld [vmem:[#allocation2 + $0x68] sm:$0xff]
    %v66 = vld [vmem:[#allocation2 + $0x70] sm:$0xff]
    %v67 = vld [vmem:[#allocation2 + $0x78] sm:$0xff]
    %v68 = vld [vmem:[#allocation2 + $0x80] sm:$0xff]
    %v69 = vld [vmem:[#allocation2 + $0x88] sm:$0xff]
    %v70 = vld [vmem:[#allocation2 + $0x90] sm:$0xff]
    %v71 = vld [vmem:[#allocation2 + $0x98] sm:$0xff]
    %v72 = vld [vmem:[#allocation2 + $0xa0] sm:$0xff]
    %v73 = vld [vmem:[#allocation2 + $0xa8] sm:$0xff]
    %v74 = vld [vmem:[#allocation2 + $0xb0] sm:$0xff]
    %v75 = vld [vmem:[#allocation2 + $0xb8] sm:$0xff]
    %v76 = vld [vmem:[#allocation2 + $0xc0] sm:$0xff]
    %v77 = vld [vmem:[#allocation2 + $0xc8] sm:$0xff]
    %v78 = vld [vmem:[#allocation2 + $0xd0] sm:$0xff]
    %v79 = vld [vmem:[#allocation2 + $0xd8] sm:$0xff]
    %v80 = vld [vmem:[#allocation2 + $0xe0] sm:$0xff]
    %v81 = vld [vmem:[#allocation2 + $0xe8] sm:$0xff]
    %v82 = vld [vmem:[#allocation2 + $0xf0] sm:$0xff]
    %v83 = vld [vmem:[#allocation2 + $0xf8] sm:$0xff]
    %v84 = vld [vmem:[#allocation2 + $0x100] sm:$0xff]
    %v85 = vld [vmem:[#allocation2 + $0x108] sm:$0xff]
    %v86 = vld [vmem:[#allocation2 + $0x110] sm:$0xff]
    %v87 = vld [vmem:[#allocation2 + $0x118] sm:$0xff]
    %v88 = vld [vmem:[#allocation2 + $0x120] sm:$0xff]
    %v89 = vld [vmem:[#allocation2 + $0x128] sm:$0xff]
    %v90 = vld [vmem:[#allocation2 + $0x130] sm:$0xff]
    %v91 = vld [vmem:[#allocation2 + $0x138] sm:$0xff]
    %v92 = vld [vmem:[#allocation2 + $0x140] sm:$0xff]
    %v93 = vld [vmem:[#allocation2 + $0x148] sm:$0xff]
    %v94 = vld [vmem:[#allocation2 + $0x150] sm:$0xff]
    %v95 = vld [vmem:[#allocation2 + $0x158] sm:$0xff]
    %v96 = vld [vmem:[#allocation2 + $0x160] sm:$0xff]
    %v97 = vld [vmem:[#allocation2 + $0x168] sm:$0xff]
    %v98 = vld [vmem:[#allocation2 + $0x170] sm:$0xff]
    %v99 = vld [vmem:[#allocation2 + $0x178] sm:$0xff]
    %v100 = vld [vmem:[#allocation2 + $0x180] sm:$0xff]
    %v101 = vld [vmem:[#allocation2 + $0x188] sm:$0xff]
    %v102 = vld [vmem:[#allocation2 + $0x190] sm:$0xff]
    %v103 = vld [vmem:[#allocation2 + $0x198] sm:$0xff]
    %v104 = vld [vmem:[#allocation2 + $0x1a0] sm:$0xff]
    %v105 = vld [vmem:[#allocation2 + $0x1a8] sm:$0xff]
    %v106 = vld [vmem:[#allocation2 + $0x1b0] sm:$0xff]
    %v107 = vld [vmem:[#allocation2 + $0x1b8] sm:$0xff]
    %v108 = vld [vmem:[#allocation2 + $0x1c0] sm:$0xff]
    %v109 = vld [vmem:[#allocation2 + $0x1c8] sm:$0xff]
    %v110 = vld [vmem:[#allocation2 + $0x1d0] sm:$0xff]
    %v111 = vld [vmem:[#allocation2 + $0x1d8] sm:$0xff]
    %v112 = vld [vmem:[#allocation2 + $0x1e0] sm:$0xff]
    %v113 = vld [vmem:[#allocation2 + $0x1e8] sm:$0xff]
    %v114 = vld [vmem:[#allocation2 + $0x1f0] sm:$0xff]
    %v115 = vld [vmem:[#allocation2 + $0x1f8] sm:$0xff]
    %v116 = vld [vmem:[#allocation2 + $0x200] sm:$0xff]
    %v117 = vld [vmem:[#allocation2 + $0x208] sm:$0xff]
    %v118 = vld [vmem:[#allocation2 + $0x210] sm:$0xff]
    %v119 = vld [vmem:[#allocation2 + $0x218] sm:$0xff]
    %v120 = vld [vmem:[#allocation2 + $0x220] sm:$0xff]
    %v121 = vld [vmem:[#allocation2 + $0x228] sm:$0xff]
    %v122 = vld [vmem:[#allocation2 + $0x230] sm:$0xff]
    %v123 = vld [vmem:[#allocation2 + $0x238] sm:$0xff]
    %v124 = vld [vmem:[#allocation2 + $0x240] sm:$0xff]
    %v125 = vld [vmem:[#allocation2 + $0x248] sm:$0xff]
    %v126 = vld [vmem:[#allocation2 + $0x250] sm:$0xff]
    %v127 = vld [vmem:[#allocation2 + $0x258] sm:$0xff]
    %v128 = vld [vmem:[#allocation2 + $0x260] sm:$0xff]
    %v129 = vld [vmem:[#allocation2 + $0x268] sm:$0xff]
    %v130 = vld [vmem:[#allocation2 + $0x270] sm:$0xff]
    %v131 = vld [vmem:[#allocation2 + $0x278] sm:$0xff]
    %v132 = vld [vmem:[#allocation2 + $0x280] sm:$0xff]
    %v133 = vld [vmem:[#allocation2 + $0x288] sm:$0xff]
    %v134 = vld [vmem:[#allocation2 + $0x290] sm:$0xff]
    %v135 = vld [vmem:[#allocation2 + $0x298] sm:$0xff]
    %v136 = vld [vmem:[#allocation2 + $0x2a0] sm:$0xff]
    %v137 = vld [vmem:[#allocation2 + $0x2a8] sm:$0xff]
    %v138 = vld [vmem:[#allocation2 + $0x2b0] sm:$0xff]
    %v139 = vld [vmem:[#allocation2 + $0x2b8] sm:$0xff]
    %v140 = vld [vmem:[#allocation2 + $0x2c0] sm:$0xff]
    %v141 = vld [vmem:[#allocation2 + $0x2c8] sm:$0xff]
    %v142 = vld [vmem:[#allocation2 + $0x2d0] sm:$0xff]
    %v143 = vld [vmem:[#allocation2 + $0x2d8] sm:$0xff]
    %v144 = vld [vmem:[#allocation2 + $0x2e0] sm:$0xff]
    %v145 = vld [vmem:[#allocation2 + $0x2e8] sm:$0xff]
    %v146 = vld [vmem:[#allocation2 + $0x2f0] sm:$0xff]
    %v147 = vld [vmem:[#allocation2 + $0x2f8] sm:$0xff]
    %v151 = vunpack.c.l.b16 %v49
    %v152 = vunpack.c.h.b16 %v49
    %v153 = vunpack.c.l.b16 %v50
    %v154 = vunpack.c.h.b16 %v50
    %v155 = vunpack.c.l.b16 %v51
    %v156 = vunpack.c.h.b16 %v51
    %v157 = vpack.c.b16 %v151, %v151
    %v158 = vpack.c.b16 %v152, %v152
    %v159 = vpack.c.b16 %v153, %v153
    %v160 = vpack.c.b16 %v154, %v154
    %v161 = vpack.c.b16 %v155, %v155
    %v162 = vpack.c.b16 %v156, %v156
    %v265 = vunpack.c.l.b16 %v52
    %v266 = vunpack.c.h.b16 %v52
    %v267 = vunpack.c.l.b16 %v53
    %v268 = vunpack.c.h.b16 %v53
    %v269 = vunpack.c.l.b16 %v54
    %v270 = vunpack.c.h.b16 %v54
    %v271 = vunpack.c.l.b16 %v55
    %v272 = vunpack.c.h.b16 %v55
    %v273 = vunpack.c.l.b16 %v56
    %v274 = vunpack.c.h.b16 %v56
    %v275 = vunpack.c.l.b16 %v57
    %v276 = vunpack.c.h.b16 %v57
    %v277 = vunpack.c.l.b16 %v58
    %v278 = vunpack.c.h.b16 %v58
    %v279 = vunpack.c.l.b16 %v59
    %v280 = vunpack.c.h.b16 %v59
    %v281 = vunpack.c.l.b16 %v60
    %v282 = vunpack.c.h.b16 %v60
    %v283 = vunpack.c.l.b16 %v61
    %v284 = vunpack.c.h.b16 %v61
    %v285 = vunpack.c.l.b16 %v62
    %v286 = vunpack.c.h.b16 %v62
    %v287 = vunpack.c.l.b16 %v63
    %v288 = vunpack.c.h.b16 %v63
    %v289 = vunpack.c.l.b16 %v64
    %v290 = vunpack.c.h.b16 %v64
    %v291 = vunpack.c.l.b16 %v65
    %v292 = vunpack.c.h.b16 %v65
    %v293 = vunpack.c.l.b16 %v66
    %v294 = vunpack.c.h.b16 %v66
    %v295 = vunpack.c.l.b16 %v67
    %v296 = vunpack.c.h.b16 %v67
    %v297 = vunpack.c.l.b16 %v68
    %v298 = vunpack.c.h.b16 %v68
    %v299 = vunpack.c.l.b16 %v69
    %v300 = vunpack.c.h.b16 %v69
    %v301 = vunpack.c.l.b16 %v70
    %v302 = vunpack.c.h.b16 %v70
    %v303 = vunpack.c.l.b16 %v71
    %v304 = vunpack.c.h.b16 %v71
    %v305 = vunpack.c.l.b16 %v72
    %v306 = vunpack.c.h.b16 %v72
    %v307 = vunpack.c.l.b16 %v73
    %v308 = vunpack.c.h.b16 %v73
    %v309 = vunpack.c.l.b16 %v74
    %v310 = vunpack.c.h.b16 %v74
    %v311 = vunpack.c.l.b16 %v75
    %v312 = vunpack.c.h.b16 %v75
    %v313 = vunpack.c.l.b16 %v76
    %v314 = vunpack.c.h.b16 %v76
    %v315 = vunpack.c.l.b16 %v77
    %v316 = vunpack.c.h.b16 %v77
    %v317 = vunpack.c.l.b16 %v78
    %v318 = vunpack.c.h.b16 %v78
    %v319 = vunpack.c.l.b16 %v79
    %v320 = vunpack.c.h.b16 %v79
    %v321 = vunpack.c.l.b16 %v80
    %v322 = vunpack.c.h.b16 %v80
    %v323 = vunpack.c.l.b16 %v81
    %v324 = vunpack.c.h.b16 %v81
    %v325 = vunpack.c.l.b16 %v82
    %v326 = vunpack.c.h.b16 %v82
    %v327 = vunpack.c.l.b16 %v83
    %v328 = vunpack.c.h.b16 %v83
    %v329 = vunpack.c.l.b16 %v84
    %v330 = vunpack.c.h.b16 %v84
    %v331 = vunpack.c.l.b16 %v85
    %v332 = vunpack.c.h.b16 %v85
    %v333 = vunpack.c.l.b16 %v86
    %v334 = vunpack.c.h.b16 %v86
    %v335 = vunpack.c.l.b16 %v87
    %v336 = vunpack.c.h.b16 %v87
    %v337 = vunpack.c.l.b16 %v88
    %v338 = vunpack.c.h.b16 %v88
    %v339 = vunpack.c.l.b16 %v89
    %v340 = vunpack.c.h.b16 %v89
    %v341 = vunpack.c.l.b16 %v90
    %v342 = vunpack.c.h.b16 %v90
    %v343 = vunpack.c.l.b16 %v91
    %v344 = vunpack.c.h.b16 %v91
    %v345 = vunpack.c.l.b16 %v92
    %v346 = vunpack.c.h.b16 %v92
    %v347 = vunpack.c.l.b16 %v93
    %v348 = vunpack.c.h.b16 %v93
    %v349 = vunpack.c.l.b16 %v94
    %v350 = vunpack.c.h.b16 %v94
    %v351 = vunpack.c.l.b16 %v95
    %v352 = vunpack.c.h.b16 %v95
    %v353 = vunpack.c.l.b16 %v96
    %v354 = vunpack.c.h.b16 %v96
    %v355 = vunpack.c.l.b16 %v97
    %v356 = vunpack.c.h.b16 %v97
    %v357 = vunpack.c.l.b16 %v98
    %v358 = vunpack.c.h.b16 %v98
    %v359 = vunpack.c.l.b16 %v99
    %v360 = vunpack.c.h.b16 %v99
    %v361 = vunpack.c.l.b16 %v100
    %v362 = vunpack.c.h.b16 %v100
    %v363 = vunpack.c.l.b16 %v101
    %v364 = vunpack.c.h.b16 %v101
    %v365 = vunpack.c.l.b16 %v102
    %v366 = vunpack.c.h.b16 %v102
    %v367 = vunpack.c.l.b16 %v103
    %v368 = vunpack.c.h.b16 %v103
    %v369 = vunpack.c.l.b16 %v104
    %v370 = vunpack.c.h.b16 %v104
    %v371 = vunpack.c.l.b16 %v105
    %v372 = vunpack.c.h.b16 %v105
    %v373 = vunpack.c.l.b16 %v106
    %v374 = vunpack.c.h.b16 %v106
    %v375 = vunpack.c.l.b16 %v107
    %v376 = vunpack.c.h.b16 %v107
    %v377 = vunpack.c.l.b16 %v108
    %v378 = vunpack.c.h.b16 %v108
    %v379 = vunpack.c.l.b16 %v109
    %v380 = vunpack.c.h.b16 %v109
    %v381 = vunpack.c.l.b16 %v110
    %v382 = vunpack.c.h.b16 %v110
    %v383 = vunpack.c.l.b16 %v111
    %v384 = vunpack.c.h.b16 %v111
    %v385 = vunpack.c.l.b16 %v112
    %v386 = vunpack.c.h.b16 %v112
    %v387 = vunpack.c.l.b16 %v113
    %v388 = vunpack.c.h.b16 %v113
    %v389 = vunpack.c.l.b16 %v114
    %v390 = vunpack.c.h.b16 %v114
    %v391 = vunpack.c.l.b16 %v115
    %v392 = vunpack.c.h.b16 %v115
    %v393 = vunpack.c.l.b16 %v116
    %v394 = vunpack.c.h.b16 %v116
    %v395 = vunpack.c.l.b16 %v117
    %v396 = vunpack.c.h.b16 %v117
    %v397 = vunpack.c.l.b16 %v118
    %v398 = vunpack.c.h.b16 %v118
    %v399 = vunpack.c.l.b16 %v119
    %v400 = vunpack.c.h.b16 %v119
    %v401 = vunpack.c.l.b16 %v120
    %v402 = vunpack.c.h.b16 %v120
    %v403 = vunpack.c.l.b16 %v121
    %v404 = vunpack.c.h.b16 %v121
    %v405 = vunpack.c.l.b16 %v122
    %v406 = vunpack.c.h.b16 %v122
    %v407 = vunpack.c.l.b16 %v123
    %v408 = vunpack.c.h.b16 %v123
    %v409 = vunpack.c.l.b16 %v124
    %v410 = vunpack.c.h.b16 %v124
    %v411 = vunpack.c.l.b16 %v125
    %v412 = vunpack.c.h.b16 %v125
    %v413 = vunpack.c.l.b16 %v126
    %v414 = vunpack.c.h.b16 %v126
    %v415 = vunpack.c.l.b16 %v127
    %v416 = vunpack.c.h.b16 %v127
    %v417 = vunpack.c.l.b16 %v128
    %v418 = vunpack.c.h.b16 %v128
    %v419 = vunpack.c.l.b16 %v129
    %v420 = vunpack.c.h.b16 %v129
    %v421 = vunpack.c.l.b16 %v130
    %v422 = vunpack.c.h.b16 %v130
    %v423 = vunpack.c.l.b16 %v131
    %v424 = vunpack.c.h.b16 %v131
    %v425 = vunpack.c.l.b16 %v132
    %v426 = vunpack.c.h.b16 %v132
    %v427 = vunpack.c.l.b16 %v133
    %v428 = vunpack.c.h.b16 %v133
    %v429 = vunpack.c.l.b16 %v134
    %v430 = vunpack.c.h.b16 %v134
    %v431 = vunpack.c.l.b16 %v135
    %v432 = vunpack.c.h.b16 %v135
    %v433 = vunpack.c.l.b16 %v136
    %v434 = vunpack.c.h.b16 %v136
    %v435 = vunpack.c.l.b16 %v137
    %v436 = vunpack.c.h.b16 %v137
    %v437 = vunpack.c.l.b16 %v138
    %v438 = vunpack.c.h.b16 %v138
    %v439 = vunpack.c.l.b16 %v139
    %v440 = vunpack.c.h.b16 %v139
    %v441 = vunpack.c.l.b16 %v140
    %v442 = vunpack.c.h.b16 %v140
    %v443 = vunpack.c.l.b16 %v141
    %v444 = vunpack.c.h.b16 %v141
    %v445 = vunpack.c.l.b16 %v142
    %v446 = vunpack.c.h.b16 %v142
    %v447 = vunpack.c.l.b16 %v143
    %v448 = vunpack.c.h.b16 %v143
    %v449 = vunpack.c.l.b16 %v144
    %v450 = vunpack.c.h.b16 %v144
    %v451 = vunpack.c.l.b16 %v145
    %v452 = vunpack.c.h.b16 %v145
    %v453 = vunpack.c.l.b16 %v146
    %v454 = vunpack.c.h.b16 %v146
    %v455 = vunpack.c.l.b16 %v147
    %v456 = vunpack.c.h.b16 %v147
    %v457 = vpack.c.b16 %v267, %v265
    %v458 = vpack.c.b16 %v268, %v266
    %v459 = vpack.c.b16 %v271, %v269
    %v460 = vpack.c.b16 %v272, %v270
    %v461 = vpack.c.b16 %v275, %v273
    %v462 = vpack.c.b16 %v276, %v274
    %v463 = vpack.c.b16 %v279, %v277
    %v464 = vpack.c.b16 %v280, %v278
    %v465 = vpack.c.b16 %v283, %v281
    %v466 = vpack.c.b16 %v284, %v282
    %v467 = vpack.c.b16 %v287, %v285
    %v468 = vpack.c.b16 %v288, %v286
    %v469 = vpack.c.b16 %v291, %v289
    %v470 = vpack.c.b16 %v292, %v290
    %v471 = vpack.c.b16 %v295, %v293
    %v472 = vpack.c.b16 %v296, %v294
    %v473 = vpack.c.b16 %v299, %v297
    %v474 = vpack.c.b16 %v300, %v298
    %v475 = vpack.c.b16 %v303, %v301
    %v476 = vpack.c.b16 %v304, %v302
    %v477 = vpack.c.b16 %v307, %v305
    %v478 = vpack.c.b16 %v308, %v306
    %v479 = vpack.c.b16 %v311, %v309
    %v480 = vpack.c.b16 %v312, %v310
    %v481 = vpack.c.b16 %v315, %v313
    %v482 = vpack.c.b16 %v316, %v314
    %v483 = vpack.c.b16 %v319, %v317
    %v484 = vpack.c.b16 %v320, %v318
    %v485 = vpack.c.b16 %v323, %v321
    %v486 = vpack.c.b16 %v324, %v322
    %v487 = vpack.c.b16 %v327, %v325
    %v488 = vpack.c.b16 %v328, %v326
    %v489 = vpack.c.b16 %v331, %v329
    %v490 = vpack.c.b16 %v332, %v330
    %v491 = vpack.c.b16 %v335, %v333
    %v492 = vpack.c.b16 %v336, %v334
    %v493 = vpack.c.b16 %v339, %v337
    %v494 = vpack.c.b16 %v340, %v338
    %v495 = vpack.c.b16 %v343, %v341
    %v496 = vpack.c.b16 %v344, %v342
    %v497 = vpack.c.b16 %v347, %v345
    %v498 = vpack.c.b16 %v348, %v346
    %v499 = vpack.c.b16 %v351, %v349
    %v500 = vpack.c.b16 %v352, %v350
    %v501 = vpack.c.b16 %v355, %v353
    %v502 = vpack.c.b16 %v356, %v354
    %v503 = vpack.c.b16 %v359, %v357
    %v504 = vpack.c.b16 %v360, %v358
    %v505 = vpack.c.b16 %v363, %v361
    %v506 = vpack.c.b16 %v364, %v362
    %v507 = vpack.c.b16 %v367, %v365
    %v508 = vpack.c.b16 %v368, %v366
    %v509 = vpack.c.b16 %v371, %v369
    %v510 = vpack.c.b16 %v372, %v370
    %v511 = vpack.c.b16 %v375, %v373
    %v512 = vpack.c.b16 %v376, %v374
    %v513 = vpack.c.b16 %v379, %v377
    %v514 = vpack.c.b16 %v380, %v378
    %v515 = vpack.c.b16 %v383, %v381
    %v516 = vpack.c.b16 %v384, %v382
    %v517 = vpack.c.b16 %v387, %v385
    %v518 = vpack.c.b16 %v388, %v386
    %v519 = vpack.c.b16 %v391, %v389
    %v520 = vpack.c.b16 %v392, %v390
    %v521 = vpack.c.b16 %v395, %v393
    %v522 = vpack.c.b16 %v396, %v394
    %v523 = vpack.c.b16 %v399, %v397
    %v524 = vpack.c.b16 %v400, %v398
    %v525 = vpack.c.b16 %v403, %v401
    %v526 = vpack.c.b16 %v404, %v402
    %v527 = vpack.c.b16 %v407, %v405
    %v528 = vpack.c.b16 %v408, %v406
    %v529 = vpack.c.b16 %v411, %v409
    %v530 = vpack.c.b16 %v412, %v410
    %v531 = vpack.c.b16 %v415, %v413
    %v532 = vpack.c.b16 %v416, %v414
    %v533 = vpack.c.b16 %v419, %v417
    %v534 = vpack.c.b16 %v420, %v418
    %v535 = vpack.c.b16 %v423, %v421
    %v536 = vpack.c.b16 %v424, %v422
    %v537 = vpack.c.b16 %v427, %v425
    %v538 = vpack.c.b16 %v428, %v426
    %v539 = vpack.c.b16 %v431, %v429
    %v540 = vpack.c.b16 %v432, %v430
    %v541 = vpack.c.b16 %v435, %v433
    %v542 = vpack.c.b16 %v436, %v434
    %v543 = vpack.c.b16 %v439, %v437
    %v544 = vpack.c.b16 %v440, %v438
    %v545 = vpack.c.b16 %v443, %v441
    %v546 = vpack.c.b16 %v444, %v442
    %v547 = vpack.c.b16 %v447, %v445
    %v548 = vpack.c.b16 %v448, %v446
    %v549 = vpack.c.b16 %v451, %v449
    %v550 = vpack.c.b16 %v452, %v450
    %v551 = vpack.c.b16 %v455, %v453
    %v552 = vpack.c.b16 %v456, %v454
    %649 = vmatpush.bf16.msra.mxu0 %v471
    %650 = vmatpush.bf16.msra.mxu0 %v469
    %651 = vmatpush.bf16.msra.mxu0 %v467
    %652 = vmatpush.bf16.msra.mxu0 %v465
    %653 = vmatpush.bf16.msra.mxu0 %v463
    %654 = vmatpush.bf16.msra.mxu0 %v461
    %655 = vmatpush.bf16.msra.mxu0 %v459
    %656 = vmatpush.bf16.msra.mxu0 %v457
    %657 = vmatmul.bf16.gmra.mxu0 %v157
    %v658 = vpop.f32.mrf.mxu0
    %v659 = vadd.f32 0.0, %v658
    %v660 = vpop.f32.mrf.mxu0
    %661 = vdwg.mxu0
    %662 = vmatpush.bf16.msra.mxu0 %v487
    %663 = vmatpush.bf16.msra.mxu0 %v485
    %664 = vmatpush.bf16.msra.mxu0 %v483
    %665 = vmatpush.bf16.msra.mxu0 %v481
    %666 = vmatpush.bf16.msra.mxu0 %v479
    %667 = vmatpush.bf16.msra.mxu0 %v477
    %668 = vmatpush.bf16.msra.mxu0 %v475
    %669 = vmatpush.bf16.msra.mxu0 %v473
    %670 = vmatmul.bf16.gmra.mxu0 %v158
    %v671 = vpop.f32.mrf.mxu0
    %v672 = vadd.f32 %v659, %v671
    %v673 = vpop.f32.mrf.mxu0
    %674 = vdwg.mxu0
    %675 = vmatpush.bf16.msra.mxu0 %v503
    %676 = vmatpush.bf16.msra.mxu0 %v501
    %677 = vmatpush.bf16.msra.mxu0 %v499
    %678 = vmatpush.bf16.msra.mxu0 %v497
    %679 = vmatpush.bf16.msra.mxu0 %v495
    %680 = vmatpush.bf16.msra.mxu0 %v493
    %681 = vmatpush.bf16.msra.mxu0 %v491
    %682 = vmatpush.bf16.msra.mxu0 %v489
    %683 = vmatmul.bf16.gmra.mxu0 %v159
    %v684 = vpop.f32.mrf.mxu0
    %v685 = vadd.f32 %v672, %v684
    %v686 = vpop.f32.mrf.mxu0
    %687 = vdwg.mxu0
    %688 = vmatpush.bf16.msra.mxu0 %v519
    %689 = vmatpush.bf16.msra.mxu0 %v517
    %690 = vmatpush.bf16.msra.mxu0 %v515
    %691 = vmatpush.bf16.msra.mxu0 %v513
    %692 = vmatpush.bf16.msra.mxu0 %v511
    %693 = vmatpush.bf16.msra.mxu0 %v509
    %694 = vmatpush.bf16.msra.mxu0 %v507
    %695 = vmatpush.bf16.msra.mxu0 %v505
    %696 = vmatmul.bf16.gmra.mxu0 %v160
    %v697 = vpop.f32.mrf.mxu0
    %v698 = vadd.f32 %v685, %v697
    %v699 = vpop.f32.mrf.mxu0
    %700 = vdwg.mxu0
    %701 = vmatpush.bf16.msra.mxu0 %v535
    %702 = vmatpush.bf16.msra.mxu0 %v533
    %703 = vmatpush.bf16.msra.mxu0 %v531
    %704 = vmatpush.bf16.msra.mxu0 %v529
    %705 = vmatpush.bf16.msra.mxu0 %v527
    %706 = vmatpush.bf16.msra.mxu0 %v525
    %707 = vmatpush.bf16.msra.mxu0 %v523
    %708 = vmatpush.bf16.msra.mxu0 %v521
    %709 = vmatmul.bf16.gmra.mxu0 %v161
    %v710 = vpop.f32.mrf.mxu0
    %v711 = vadd.f32 %v698, %v710
    %v712 = vpop.f32.mrf.mxu0
    %713 = vdwg.mxu0
    %714 = vmatpush.bf16.msra.mxu0 %v551
    %715 = vmatpush.bf16.msra.mxu0 %v549
    %716 = vmatpush.bf16.msra.mxu0 %v547
    %717 = vmatpush.bf16.msra.mxu0 %v545
    %718 = vmatpush.bf16.msra.mxu0 %v543
    %719 = vmatpush.bf16.msra.mxu0 %v541
    %720 = vmatpush.bf16.msra.mxu0 %v539
    %721 = vmatpush.bf16.msra.mxu0 %v537
    %722 = vmatmul.bf16.gmra.mxu0 %v162
    %v723 = vpop.f32.mrf.mxu0
    %v724 = vadd.f32 %v711, %v723
    %v725 = vpop.f32.mrf.mxu0
    %726 = vdwg.mxu0
    %727 = vmatpush.bf16.msra.mxu0 %v472
    %728 = vmatpush.bf16.msra.mxu0 %v470
    %729 = vmatpush.bf16.msra.mxu0 %v468
    %730 = vmatpush.bf16.msra.mxu0 %v466
    %731 = vmatpush.bf16.msra.mxu0 %v464
    %732 = vmatpush.bf16.msra.mxu0 %v462
    %733 = vmatpush.bf16.msra.mxu0 %v460
    %734 = vmatpush.bf16.msra.mxu0 %v458
    %735 = vmatmul.bf16.gmra.mxu0 %v157
    %v736 = vpop.f32.mrf.mxu0
    %v737 = vadd.f32 0.0, %v736
    %v738 = vpop.f32.mrf.mxu0
    %739 = vdwg.mxu0
    %740 = vmatpush.bf16.msra.mxu0 %v488
    %741 = vmatpush.bf16.msra.mxu0 %v486
    %742 = vmatpush.bf16.msra.mxu0 %v484
    %743 = vmatpush.bf16.msra.mxu0 %v482
    %744 = vmatpush.bf16.msra.mxu0 %v480
    %745 = vmatpush.bf16.msra.mxu0 %v478
    %746 = vmatpush.bf16.msra.mxu0 %v476
    %747 = vmatpush.bf16.msra.mxu0 %v474
    %748 = vmatmul.bf16.gmra.mxu0 %v158
    %v749 = vpop.f32.mrf.mxu0
    %v750 = vadd.f32 %v737, %v749
    %v751 = vpop.f32.mrf.mxu0
    %752 = vdwg.mxu0
    %753 = vmatpush.bf16.msra.mxu0 %v504
    %754 = vmatpush.bf16.msra.mxu0 %v502
    %755 = vmatpush.bf16.msra.mxu0 %v500
    %756 = vmatpush.bf16.msra.mxu0 %v498
    %757 = vmatpush.bf16.msra.mxu0 %v496
    %758 = vmatpush.bf16.msra.mxu0 %v494
    %759 = vmatpush.bf16.msra.mxu0 %v492
    %760 = vmatpush.bf16.msra.mxu0 %v490
    %761 = vmatmul.bf16.gmra.mxu0 %v159
    %v762 = vpop.f32.mrf.mxu0
    %v763 = vadd.f32 %v750, %v762
    %v764 = vpop.f32.mrf.mxu0
    %765 = vdwg.mxu0
    %766 = vmatpush.bf16.msra.mxu0 %v520
    %767 = vmatpush.bf16.msra.mxu0 %v518
    %768 = vmatpush.bf16.msra.mxu0 %v516
    %769 = vmatpush.bf16.msra.mxu0 %v514
    %770 = vmatpush.bf16.msra.mxu0 %v512
    %771 = vmatpush.bf16.msra.mxu0 %v510
    %772 = vmatpush.bf16.msra.mxu0 %v508
    %773 = vmatpush.bf16.msra.mxu0 %v506
    %774 = vmatmul.bf16.gmra.mxu0 %v160
    %v775 = vpop.f32.mrf.mxu0
    %v776 = vadd.f32 %v763, %v775
    %v777 = vpop.f32.mrf.mxu0
    %778 = vdwg.mxu0
    %779 = vmatpush.bf16.msra.mxu0 %v536
    %780 = vmatpush.bf16.msra.mxu0 %v534
    %781 = vmatpush.bf16.msra.mxu0 %v532
    %782 = vmatpush.bf16.msra.mxu0 %v530
    %783 = vmatpush.bf16.msra.mxu0 %v528
    %784 = vmatpush.bf16.msra.mxu0 %v526
    %785 = vmatpush.bf16.msra.mxu0 %v524
    %786 = vmatpush.bf16.msra.mxu0 %v522
    %787 = vmatmul.bf16.gmra.mxu0 %v161
    %v788 = vpop.f32.mrf.mxu0
    %v789 = vadd.f32 %v776, %v788
    %v790 = vpop.f32.mrf.mxu0
    %791 = vdwg.mxu0
    %792 = vmatpush.bf16.msra.mxu0 %v552
    %793 = vmatpush.bf16.msra.mxu0 %v550
    %794 = vmatpush.bf16.msra.mxu0 %v548
    %795 = vmatpush.bf16.msra.mxu0 %v546
    %796 = vmatpush.bf16.msra.mxu0 %v544
    %797 = vmatpush.bf16.msra.mxu0 %v542
    %798 = vmatpush.bf16.msra.mxu0 %v540
    %799 = vmatpush.bf16.msra.mxu0 %v538
    %800 = vmatmul.bf16.gmra.mxu0 %v162
    %v801 = vpop.f32.mrf.mxu0
    %v802 = vadd.f32 %v789, %v801
    %v803 = vpop.f32.mrf.mxu0
    %804 = vdwg.mxu0
    %v805 = vadd.f32 %v43, %v724
    %v806 = vadd.f32 %v44, %v802
    %807 = vst [vmem:[%s3] sm:$0xff] %v805
    %808 = vst [vmem:[%s3 + $0x8] sm:$0xff] %v806
    // Predicated region
    $region22: #{fmri_model.1} parent=1 // pred_check
      _
    $region23: #{fmri_model.1} parent=1 // pred_check_branch
      %810 = sbr.rel (0) target = $region25
    $region24: #{fmri_model.1} parent=1 // pred_region
      _
    $region25: #{fmri_model.1} parent=1 // pred_fallthru
      _
    // Predicated region
    $region26: #{fmri_model.1} parent=1 // pred_check
      _
    $region27: #{fmri_model.1} parent=1 // pred_check_branch
      %812 = sbr.rel (0) target = $region29
    $region28: #{fmri_model.1} parent=1 // pred_region
      _
    $region29: #{fmri_model.1} parent=1 // pred_fallthru
      _
    %813 = vsyncpa [#allocation3], 1

</llo_original>
